<compile_context>
chip_gen: v6e
topology: v6e:2x2x1
jax: 0.10.0
libtpu: 0.0.40
codegen_flags: <defaults>
</compile_context>

<pallas_src>
import jax
import jax.numpy as jnp
from jax.experimental import pallas as pl
from jax.experimental.pallas import tpu as pltpu


# ----------------------------------------------------------------------------
# Host-side helpers copied in semantics from the PyTorch file
# ----------------------------------------------------------------------------
def islist(x):
    return isinstance(x, list) or isinstance(x, tuple)


def smooth(s, e, t, maxt):
    if t >= maxt:
        return e
    else:
        return s + t / maxt * (e - s)


def smooth_weight(w, t):
    if islist(w):
        s, e, maxt = w
        return smooth(s, e, t, maxt)
    else:
        return w


class _Trainer:
    def __init__(self, epoch_idx):
        self.epoch_idx = epoch_idx


global_dict = {}


# ----------------------------------------------------------------------------
# Pallas kernels (hot-path reductions of the individual loss layers)
#
# Block layouts (kernel view):
#   logits : (1, C, TS, 128) f32/bf16   -- dense (TS,128) pixel slabs per class
#   labels : (1, TS, 128)    int32
#   out    : (1, TS, 128)    f32        -- lane-dense accumulator, resident
#                                          across the reduction grid axis
# ----------------------------------------------------------------------------
def _ce_sum_kernel(logits_ref, labels_ref, out_ref):
    j = pl.program_id(1)

    @pl.when(j == 0)
    def _():
        out_ref[...] = jnp.zeros_like(out_ref)

    x = logits_ref[0].astype(jnp.float32)                    # (C, TS, 128)
    lab = labels_ref[0]                                      # (TS, 128) i32
    C = x.shape[0]

    m = jnp.max(x, axis=0)                                   # (TS, 128) VPU
    e = jnp.exp(x - m[None])                                 # EUP
    lse = jnp.log(jnp.sum(e, axis=0)) + m                    # (TS, 128)

    cls = jax.lax.broadcasted_iota(jnp.int32, x.shape, 0)    # (C, TS, 128)
    picked = jnp.sum(jnp.where(cls == lab[None], x, 0.0), axis=0)

    valid = (lab >= 0) & (lab < C)                           # padded px -> 0
    ce = jnp.where(valid, lse - picked, 0.0)                 # (TS, 128)
    out_ref[...] = out_ref[...] + ce[None]


def _softmax_mse_sum_kernel(logits_ref, labels_ref, out_ref):
    j = pl.program_id(1)

    @pl.when(j == 0)
    def _():
        out_ref[...] = jnp.zeros_like(out_ref)

    x = logits_ref[0].astype(jnp.float32)                    # (C, TS, 128)
    lab = labels_ref[0]                                      # (TS, 128) i32
    C = x.shape[0]

    m = jnp.max(x, axis=0)
    e = jnp.exp(x - m[None])                                 # (C, TS, 128)
    s = jnp.sum(e, axis=0)                                   # s in [1, C]
    r = pl.reciprocal(s, approx=True)                        # EUP, no divide

    cls = jax.lax.broadcasted_iota(jnp.int32, x.shape, 0)
    e_lab = jnp.sum(jnp.where(cls == lab[None], e, 0.0), axis=0)
    sum_e2 = jnp.sum(e * e, axis=0)

    # sum_c (softmax_c - onehot_c)^2 = sum(p^2) - 2*p_label + 1
    contrib = sum_e2 * (r * r) - 2.0 * (e_lab * r) + 1.0
    valid = (lab >= 0) & (lab < C)
    contrib = jnp.where(valid, contrib, 0.0)
    out_ref[...] = out_ref[...] + contrib[None]


# ----------------------------------------------------------------------------
# Wrapper: layout prep, tiling choice, pallas_call
# ----------------------------------------------------------------------------
def _round_up(x, m):
    return ((x + m - 1) // m) * m


_MAX_LOGITS_BLOCK_BYTES = 2 << 20     # ~2 MiB logits block per grid step
_MAX_TILE_SUB = 128                   # <= 16K pixels per tile


def _choose_tiling(n, c, itemsize):
    """Return (tile_sublane_groups, padded_pixel_count).

    Tile is either the full pixel extent (one step per batch) or a multiple of
    8 sublane groups; the pixel axis is padded so the tile always divides it.
    """
    n_sub = pl.cdiv(n, 128)
    bytes_per_sub = c * 128 * itemsize
    cap = max(8, (_MAX_LOGITS_BLOCK_BYTES // max(1, bytes_per_sub)) // 8 * 8)
    if n_sub <= cap:
        ts = n_sub                                  # full extent, single step
    else:
        ts = min(_MAX_TILE_SUB, cap)                # multiple of 8
    n_sub_pad = _round_up(n_sub, ts)
    return ts, n_sub_pad * 128


def _prep_inputs(logits, target, n_pad):
    """(B,C,H,W)/(B,H,W) -> (B,C,n_sub,128)/(B,n_sub,128); free reshapes plus
    a pad only when needed (padded labels = -1 so they are masked out)."""
    B, C, H, W = logits.shape
    n = H * W
    x = logits.reshape(B, C, n)
    lab = target.reshape(B, n).astype(jnp.int32)
    if n_pad != n:
        x = jnp.pad(x, ((0, 0), (0, 0), (0, n_pad - n)))
        lab = jnp.pad(lab, ((0, 0), (0, n_pad - n)), constant_values=-1)
    n_sub = n_pad // 128
    return x.reshape(B, C, n_sub, 128), lab.reshape(B, n_sub, 128), n_sub


def _run_reduction(kernel_fn, logits, target):
    """Returns the summed per-pixel loss contribution over all B*H*W pixels."""
    B, C, H, W = logits.shape
    ts, n_pad = _choose_tiling(H * W, C, logits.dtype.itemsize)
    x, lab, n_sub = _prep_inputs(logits, target, n_pad)
    grid = (B, n_sub // ts)

    cparams = dict(dimension_semantics=("parallel", "arbitrary"))
    # v5e guard: scoped-VMEM default is 16 MiB; only raise it if tiles grow.
    block_bytes = (C * ts * 128 * x.dtype.itemsize   # logits block
                   + ts * 128 * 4                    # labels block
                   + ts * 128 * 4)                   # resident out block
    vmem_needed = 3 * block_bytes + (1 << 20)
    if vmem_needed > (12 << 20):
        cparams["vmem_limit_bytes"] = min(2 * vmem_needed, 48 << 20)

    partial = pl.pallas_call(
        kernel_fn,
        out_shape=jax.ShapeDtypeStruct((B, ts, 128), jnp.float32),
        grid_spec=pltpu.PrefetchScalarGridSpec(
            num_scalar_prefetch=0,
            grid=grid,
            in_specs=[
                pl.BlockSpec((1, C, ts, 128), lambda b, j: (b, 0, j, 0)),
                pl.BlockSpec((1, ts, 128), lambda b, j: (b, j, 0)),
            ],
            out_specs=pl.BlockSpec((1, ts, 128), lambda b, j: (b, 0, 0)),
        ),
        compiler_params=pltpu.CompilerParams(**cparams),
    )(x, lab)
    # Single tiny cross-lane reduce outside the kernel.
    return jnp.sum(partial)


# ----------------------------------------------------------------------------
# Concrete loss "layers" (same call signature as the torch layers), with a
# per-forward dedupe cache so identical layers on the same tensors share one
# kernel launch.
# ----------------------------------------------------------------------------
_layer_cache = {}


def _cached(key, fn):
    if key not in _layer_cache:
        _layer_cache[key] = fn()
    return _layer_cache[key]


def main_ce_layer(result, target):
    logits = result["pred"]                      # (B, C, H, W)
    B, C, H, W = logits.shape
    N = B * H * W
    s = _cached(("ce", id(logits), id(target)),
                lambda: _run_reduction(_ce_sum_kernel, logits, target))
    # TODO(synk): ignore_index-style label masking (e.g. 255) not handled;
    # all in-range pixels are counted in the mean, matching the reference.
    return {"main_loss": s / N}                  # mean over pixels


def _aux_softmax_mse_mean(result, target):
    logits = result["aux"]                       # (B, C, H, W)
    B, C, H, W = logits.shape
    N = B * H * W
    s = _cached(("softmax_mse", id(logits), id(target)),
                lambda: _run_reduction(_softmax_mse_sum_kernel, logits, target))
    return s / (C * N)                           # mean over all elements


def aux_mse_layer(result, target):
    return {"aux_loss": _aux_softmax_mse_mean(result, target)}


def aux2_layer(result, target):
    return {"aux2_loss": _aux_softmax_mse_mean(result, target)}


# ----------------------------------------------------------------------------
# JointMultiLoss — same forward semantics as the PyTorch module
# ----------------------------------------------------------------------------
class JointMultiLoss:
    def __init__(self, layers, weights, assert_main_loss=True):
        self.smooth = False
        for w in weights:
            if islist(w) or isinstance(w, dict):
                self.smooth = True
                break
        self.layers = layers
        self.weights = weights
        self.assert_main_loss = assert_main_loss

    def __call__(self, result, target):
        _layer_cache.clear()                     # per-forward dedupe cache
        weights = list(self.weights).copy()
        # smooth  (host-side Python scheduling, exactly like the torch code)
        if self.smooth:
            trainer = global_dict['trainer']
            t = trainer.epoch_idx
            for i in range(len(weights)):
                w = smooth_weight(weights[i], t)
                if isinstance(w, dict):
                    if 'delay' in w:
                        delay = w['delay']
                        if t < delay:
                            weights[i] = w['init']
                        else:
                            weights[i] = smooth_weight(w['then'], t - delay)
                else:
                    weights[i] = w
        loss_dict = {}
        for layer, w in zip(self.layers, weights):
            if w != 0:
                ld = layer(result, target)
                for k, v in ld.items():
                    loss_dict[k] = v * w
        return loss_dict


# ----------------------------------------------------------------------------
# Pure-JAX references (for silent sanity checking only)
# ----------------------------------------------------------------------------
def _ref_ce(logits, labels):
    x = jnp.moveaxis(logits, 1, -1)              # (B, H, W, C)
    lse = jax.nn.logsumexp(x, axis=-1)
    picked = jnp.take_along_axis(x, labels[..., None], axis=-1)[..., 0]
    return jnp.mean(lse - picked)


def _ref_softmax_mse(logits, labels):
    x = jnp.moveaxis(logits, 1, -1)
    p = jax.nn.softmax(x, axis=-1)
    oh = jax.nn.one_hot(labels, x.shape[-1], dtype=jnp.float32)
    return jnp.mean((p - oh) ** 2)


# ----------------------------------------------------------------------------
if __name__ == "__main__":
    key = jax.random.PRNGKey(0)
    B, C, H, W = 2, 4, 16, 16
    k1, k2, k3 = jax.random.split(key, 3)
    pred = jax.random.normal(k1, (B, C, H, W), jnp.float32)
    aux = jax.random.normal(k2, (B, C, H, W), jnp.float32)
    target = jax.random.randint(k3, (B, H, W), 0, C, jnp.int32)

    # trainer stub used by the smooth-weight schedule (epoch 3)
    global_dict['trainer'] = _Trainer(epoch_idx=3)

    # weights: plain float, smoothing list (s, e, maxt), and a delayed dict
    # whose weight is 0.0 at epoch 3 (< delay) -> that layer is skipped.
    joint = JointMultiLoss(
        layers=[main_ce_layer, aux_mse_layer, aux2_layer],
        weights=[1.0, [0.2, 0.8, 10], {'delay': 5, 'init': 0.0,
                                       'then': [0.1, 1.0, 10]}],
    )

    result = {"pred": pred, "aux": aux}
    loss_dict = joint(result, target)
    loss_dict = {k: jax.block_until_ready(v) for k, v in loss_dict.items()}

    # silent sanity checks against pure-JAX references
    w_aux = smooth(0.2, 0.8, 3, 10)
    assert "main_loss" in loss_dict and "aux_loss" in loss_dict
    assert "aux2_loss" not in loss_dict  # skipped (weight 0 at epoch 3)
    main_ref = float(_ref_ce(pred, target)) * 1.0
    aux_ref = float(_ref_softmax_mse(aux, target)) * w_aux
    assert abs(float(loss_dict["main_loss"]) - main_ref) < 1e-4
    # aux kernel uses pl.reciprocal(approx=True) -> slightly looser tolerance
    assert abs(float(loss_dict["aux_loss"]) - aux_ref) < 1e-3 + 1e-3 * abs(aux_ref)

    print("KERNEL_OK")
</pallas_src>

<mosaic_0001>
module attributes {stable_mosaic.version = 11 : i64} {
  func.func @_ce_sum_kernel(%arg0: i32, %arg1: i32, %arg2: memref<1x4x2x128xf32, #tpu.memory_space<vmem>>, %arg3: memref<1x2x128xi32, #tpu.memory_space<vmem>>, %arg4: memref<1x2x128xf32, #tpu.memory_space<vmem>>) attributes {dimension_semantics = [#tpu.dimension_semantics<parallel>, #tpu.dimension_semantics<arbitrary>], iteration_bounds = array<i64: 2, 1>, scalar_prefetch = 0 : i64, scratch_operands = 0 : i64, tpu.core_type = #tpu.core_type<tc>, window_params = [{transform_indices = @transform_0, window_bounds = array<i64: 1, 4, 2, 128>}, {transform_indices = @transform_1, window_bounds = array<i64: 1, 2, 128>}, {transform_indices = @transform_2, window_bounds = array<i64: 1, 2, 128>}]} {
    %c0_i32 = arith.constant 0 : i32
    %0 = arith.cmpi eq, %arg1, %c0_i32 : i32
    %1 = arith.extui %0 : i1 to i32
    %c0_i32_0 = arith.constant 0 : i32
    %2 = arith.cmpi ne, %1, %c0_i32_0 : i32
    scf.if %2 {
      %cst_18 = arith.constant 0.000000e+00 : f32
      %34 = vector.broadcast %cst_18 : f32 to vector<1x2x128xf32>
      %c0_19 = arith.constant 0 : index
      %c0_20 = arith.constant 0 : index
      %c0_21 = arith.constant 0 : index
      %35 = vector.load %arg4[%c0_19, %c0_20, %c0_21] : memref<1x2x128xf32, #tpu.memory_space<vmem>>, vector<1x2x128xf32>
      tpu.vector_store %arg4[%c0_19, %c0_20, %c0_21], %34 {strides = array<i32>} : memref<1x2x128xf32, #tpu.memory_space<vmem>>, vector<1x2x128xf32>,
    } else {
    }
    %c0 = arith.constant 0 : index
    %c0_1 = arith.constant 0 : index
    %c0_2 = arith.constant 0 : index
    %c0_3 = arith.constant 0 : index
    %3 = vector.load %arg2[%c0, %c0_1, %c0_2, %c0_3] : memref<1x4x2x128xf32, #tpu.memory_space<vmem>>, vector<1x4x2x128xf32>
    %4 = vector.shape_cast %3 : vector<1x4x2x128xf32> to vector<4x2x128xf32>
    %c0_4 = arith.constant 0 : index
    %c0_5 = arith.constant 0 : index
    %c0_6 = arith.constant 0 : index
    %5 = vector.load %arg3[%c0_4, %c0_5, %c0_6] : memref<1x2x128xi32, #tpu.memory_space<vmem>>, vector<1x2x128xi32>
    %6 = vector.shape_cast %5 : vector<1x2x128xi32> to vector<2x128xi32>
    %cst = arith.constant dense<0xFF800000> : vector<2x128xf32>
    %7 = vector.multi_reduction <maximumf>, %4, %cst [0] : vector<4x2x128xf32> to vector<2x128xf32>
    %8 = vector.shape_cast %7 : vector<2x128xf32> to vector<1x2x128xf32>
    %9 = vector.broadcast %8 : vector<1x2x128xf32> to vector<4x2x128xf32>
    %10 = arith.subf %4, %9 : vector<4x2x128xf32>
    %11 = math.exp %10 : vector<4x2x128xf32>
    %cst_7 = arith.constant dense<0.000000e+00> : vector<2x128xf32>
    %12 = vector.multi_reduction <add>, %11, %cst_7 [0] : vector<4x2x128xf32> to vector<2x128xf32>
    %13 = math.log %12 : vector<2x128xf32>
    %14 = arith.addf %13, %7 : vector<2x128xf32>
    %15 = tpu.iota {dimensions = array<i32: 0>} : vector<4x2x128xi32>
    %16 = vector.shape_cast %6 : vector<2x128xi32> to vector<1x2x128xi32>
    %17 = vector.broadcast %16 : vector<1x2x128xi32> to vector<4x2x128xi32>
    %18 = arith.cmpi eq, %15, %17 : vector<4x2x128xi32>
    %cst_8 = arith.constant 0.000000e+00 : f32
    %19 = vector.broadcast %cst_8 : f32 to vector<4x2x128xf32>
    %20 = arith.select %18, %4, %19 : vector<4x2x128xi1>, vector<4x2x128xf32>
    %cst_9 = arith.constant dense<0.000000e+00> : vector<2x128xf32>
    %21 = vector.multi_reduction <add>, %20, %cst_9 [0] : vector<4x2x128xf32> to vector<2x128xf32>
    %c0_i32_10 = arith.constant 0 : i32
    %22 = vector.broadcast %c0_i32_10 : i32 to vector<2x128xi32>
    %23 = arith.cmpi sge, %6, %22 : vector<2x128xi32>
    %c4_i32 = arith.constant 4 : i32
    %24 = vector.broadcast %c4_i32 : i32 to vector<2x128xi32>
    %25 = arith.cmpi slt, %6, %24 : vector<2x128xi32>
    %26 = arith.andi %23, %25 : vector<2x128xi1>
    %27 = arith.subf %14, %21 : vector<2x128xf32>
    %cst_11 = arith.constant 0.000000e+00 : f32
    %28 = vector.broadcast %cst_11 : f32 to vector<2x128xf32>
    %29 = arith.select %26, %27, %28 : vector<2x128xi1>, vector<2x128xf32>
    %c0_12 = arith.constant 0 : index
    %c0_13 = arith.constant 0 : index
    %c0_14 = arith.constant 0 : index
    %30 = vector.load %arg4[%c0_12, %c0_13, %c0_14] : memref<1x2x128xf32, #tpu.memory_space<vmem>>, vector<1x2x128xf32>
    %31 = vector.shape_cast %29 : vector<2x128xf32> to vector<1x2x128xf32>
    %32 = arith.addf %30, %31 : vector<1x2x128xf32>
    %c0_15 = arith.constant 0 : index
    %c0_16 = arith.constant 0 : index
    %c0_17 = arith.constant 0 : index
    %33 = vector.load %arg4[%c0_15, %c0_16, %c0_17] : memref<1x2x128xf32, #tpu.memory_space<vmem>>, vector<1x2x128xf32>
    tpu.vector_store %arg4[%c0_15, %c0_16, %c0_17], %32 {strides = array<i32>} : memref<1x2x128xf32, #tpu.memory_space<vmem>>, vector<1x2x128xf32>,
    return
  }
  func.func @transform_0(%arg0: i32, %arg1: i32) -> (i32, i32, i32, i32) {
    %c0_i32 = arith.constant 0 : i32
    %c0_i32_0 = arith.constant 0 : i32
    %c0_i32_1 = arith.constant 0 : i32
    return %arg0, %c0_i32, %arg1, %c0_i32_0 : i32, i32, i32, i32
  }
  func.func @transform_1(%arg0: i32, %arg1: i32) -> (i32, i32, i32) {
    %c0_i32 = arith.constant 0 : i32
    %c0_i32_0 = arith.constant 0 : i32
    return %arg0, %arg1, %c0_i32 : i32, i32, i32
  }
  func.func @transform_2(%arg0: i32, %arg1: i32) -> (i32, i32, i32) {
    %c0_i32 = arith.constant 0 : i32
    %c0_i32_0 = arith.constant 0 : i32
    %c0_i32_1 = arith.constant 0 : i32
    return %arg0, %c0_i32, %c0_i32_0 : i32, i32, i32
  }
}

</mosaic_0001>

<llo_original>
// kernel: tpu_custom_call.1
$region0: #{tpu_custom_call.1}
  #allocation0 [shape = 'u32[]', space=smem, size = 0x4, offset = 0x4, fixed_abs, tag = 'smem constant byte address 0x4 - core index']
  #allocation1 [shape = 'u32[144,128]{1,0:T(1,128)}', space=vmem, size = 0x12000, scoped, tag = 'internal scratch']
  %s0 = inlined_call_operand.hbm [shape: f32[2,4,2,128], index: 0, kind: input, shape index: {}]
  %s1 = inlined_call_operand.hbm [shape: s32[2,2,128], index: 1, kind: input, shape index: {}]
  %s2 = inlined_call_operand.hbm [shape: f32[2,2,128], index: 2, kind: output, shape index: {}]
  %s3 = sld [smem:[#allocation0]]
  $region53: #{tpu_custom_call.1} parent=0
    _
  %s5 = ssub.s32 1, %s3
  %s6 = scalar_select 0, %s5, %s3
  $region1: #{tpu_custom_call.1} parent=0
    #allocation2 [shape = 'u8[8192]{0}', space=vmem, size = 0x2000, scoped, tag = 'input window, operand 0']
    #allocation3 [shape = 's32[2]{0}', space=sflag, size = 0x8, scoped, tag = 'scoped memory for tpu_custom_call.1']
    #allocation4 [shape = 's32[2]{0}', space=sflag, size = 0x8, scoped, tag = 'scoped memory for tpu_custom_call.1']
    #allocation5 [shape = 'u8[2048]{0}', space=vmem, size = 0x800, scoped, tag = 'input window, operand 1']
    #allocation6 [shape = 's32[2]{0}', space=sflag, size = 0x8, scoped, tag = 'scoped memory for tpu_custom_call.1']
    #allocation7 [shape = 'u8[2048]{0}', space=vmem, size = 0x800, scoped, tag = 'output window, operand 0']
    %7 = vsyncpa [#allocation3], 0
    %s8 = scalar_lea.sflag [#allocation3], 1
    %9 = vsyncpa %s8, 0
    %10 = vsyncpa [#allocation6], 0
    %s11 = scalar_lea.sflag [#allocation6], 1
    %12 = vsyncpa %s11, 0
    %13 = vsyncpa [#allocation4], 0
    %s14 = scalar_lea.sflag [#allocation4], 1
    %15 = vsyncpa %s14, 0
    loop: start=0, step=1, limit=4
    $region2: #{tpu_custom_call.1} parent=1 // loop_pre_header
      _
    $region3: #{tpu_custom_call.1} parent=1 // loop_header
      %s17 = sphi 0, %s21
      %p18 = scmp.ge.s32.totalorder %s17, 4
      %s24 = sphi 0, %s36
      %s25 = sphi 0, %s32
      %s26 = sphi 0, %s24
      %s27 = sphi 0, %s25
      %s28 = sphi 0, %s26
      %s29 = sphi 0, %s27
      %s41 = sphi 0, %s43
      %s44 = sphi 0, %s41
      %s45 = sphi 0, %s44
      %s61 = sphi 0, %s45
      %s69 = sphi 0, %s71
      %s72 = sphi 0, %s69
      %s73 = sphi 0, %s72
      %s89 = sphi 0, %s73
      %s95 = sphi 0, %s97
      %s98 = sphi 0, %s95
      %s99 = sphi 0, %s98
      %s115 = sphi 0, %s99
    $region4: #{tpu_custom_call.1} parent=1 // loop_header_branch
      %20 = sbr.rel (%p18) target = $region8
    $region5: #{tpu_custom_call.1} parent=1 // loop_body
      %s22 = ssub.s32 %s17, 1
      %s23 = ssub.s32 %s17, 2
      %s30 = sadd.s32 1, %s25
      %p31 = scmp.ge.s32.totalorder %s30, 1
      %s32 = scalar_select %p31, 0, %s30
      %s33 = sadd.s32 1, %s24
      %s34 = scalar_select %p31, %s33, %s24
      %p35 = scmp.ge.s32.totalorder %s34, 2
      %s36 = scalar_select %p35, 0, %s34
      %s37 = ssub.s32 %s24, %s36
      %s38 = ssub.s32 %s25, %s32
      %s39 = sor.u32 %s37, %s38
      %p40 = scmp.eq.s32.totalorder %s39, 0
      %s42 = sadd.s32 %s41, 1
      %s43 = scalar_select %p40, %s41, %s42
      %p46 = pneg %p40
      %p47 = scmp.eq.s32.totalorder %s17, 1
      %p48 = por %p46, %p47
      %p49 = scmp.ne.s32.totalorder %s41, %s44
      %p50 = scmp.eq.s32.totalorder %s17, 0
      %p51 = por %p49, %p50
      %p52 = scmp.ne.s32.totalorder %s41, %s44
      %p53 = scmp.eq.s32.totalorder %s22, 1
      %p54 = por %p52, %p53
      %p55 = scmp.ne.s32.totalorder %s44, %s45
      %p56 = scmp.eq.s32.totalorder %s22, 0
      %p57 = por %p55, %p56
      %p58 = scmp.ne.s32.totalorder %s44, %s45
      %p59 = scmp.eq.s32.totalorder %s23, 1
      %p60 = por %p58, %p59
      %p62 = scmp.ne.s32.totalorder %s45, %s61
      %p63 = scmp.eq.s32.totalorder %s23, 0
      %p64 = por %p62, %p63
      %s65 = ssub.s32 %s24, %s36
      %s66 = ssub.s32 %s25, %s32
      %s67 = sor.u32 %s65, %s66
      %p68 = scmp.eq.s32.totalorder %s67, 0
      %s70 = sadd.s32 %s69, 1
      %s71 = scalar_select %p68, %s69, %s70
      %p74 = pneg %p68
      %p75 = scmp.eq.s32.totalorder %s17, 1
      %p76 = por %p74, %p75
      %p77 = scmp.ne.s32.totalorder %s69, %s72
      %p78 = scmp.eq.s32.totalorder %s17, 0
      %p79 = por %p77, %p78
      %p80 = scmp.ne.s32.totalorder %s69, %s72
      %p81 = scmp.eq.s32.totalorder %s22, 1
      %p82 = por %p80, %p81
      %p83 = scmp.ne.s32.totalorder %s72, %s73
      %p84 = scmp.eq.s32.totalorder %s22, 0
      %p85 = por %p83, %p84
      %p86 = scmp.ne.s32.totalorder %s72, %s73
      %p87 = scmp.eq.s32.totalorder %s23, 1
      %p88 = por %p86, %p87
      %p90 = scmp.ne.s32.totalorder %s73, %s89
      %p91 = scmp.eq.s32.totalorder %s23, 0
      %p92 = por %p90, %p91
      %s93 = ssub.s32 %s24, %s36
      %p94 = scmp.eq.s32.totalorder %s93, 0
      %s96 = sadd.s32 %s95, 1
      %s97 = scalar_select %p94, %s95, %s96
      %p100 = pneg %p94
      %p101 = scmp.eq.s32.totalorder %s17, 1
      %p102 = por %p100, %p101
      %p103 = scmp.ne.s32.totalorder %s95, %s98
      %p104 = scmp.eq.s32.totalorder %s17, 0
      %p105 = por %p103, %p104
      %p106 = scmp.ne.s32.totalorder %s95, %s98
      %p107 = scmp.eq.s32.totalorder %s22, 1
      %p108 = por %p106, %p107
      %p109 = scmp.ne.s32.totalorder %s98, %s99
      %p110 = scmp.eq.s32.totalorder %s22, 0
      %p111 = por %p109, %p110
      %p112 = scmp.ne.s32.totalorder %s98, %s99
      %p113 = scmp.eq.s32.totalorder %s23, 1
      %p114 = por %p112, %p113
      %p116 = scmp.ne.s32.totalorder %s99, %s115
      %p117 = scmp.eq.s32.totalorder %s23, 0
      %p118 = por %p116, %p117
      %p119 = scmp.le.s32.totalorder 1, %s17
      %p120 = scmp.lt.s32.totalorder %s17, 3
      %p121 = pnand %p119, %p120
      %p122 = pneg %p121
      // Predicated region
      $region9: #{tpu_custom_call.1} parent=5 // pred_check
        _
      $region10: #{tpu_custom_call.1} parent=5 // pred_check_branch
        %124 = sbr.rel (%p121) target = $region12
      $region11: #{tpu_custom_call.1} parent=5 // pred_region
        %s125 = ssub.s32 %s17, 1
      $region12: #{tpu_custom_call.1} parent=5 // pred_fallthru
        _
      %p126 = scmp.lt.s32.totalorder %s17, 2
      // Predicated region
      $region13: #{tpu_custom_call.1} parent=5 // pred_check
        %p127 = pneg %p126
      $region14: #{tpu_custom_call.1} parent=5 // pred_check_branch
        %129 = sbr.rel (%p127) target = $region16
      $region15: #{tpu_custom_call.1} parent=5 // pred_region
        // Predicated region
        $region17: #{tpu_custom_call.1} parent=15 // pred_check
          %p130 = pneg %p51
        $region18: #{tpu_custom_call.1} parent=15 // pred_check_branch
          %132 = sbr.rel (%p130) target = $region20
        $region19: #{tpu_custom_call.1} parent=15 // pred_region
          %s133 = sand.u32 %s41, 1
          %s134 = scalar_lea.sflag [#allocation3], %s133
          %s135 = sand.u32 %s41, 1
          %s136 = smul.addr %s135, 8
          %s137 = scalar_lea.vmem [#allocation2], %s136
          %s139 = ssub.s32 128, 128
          %140 = vsyncadd %s134, %s139
          %s141 = smul.addr %s24, 4
          %s142 = sadd.s32 %s25, %s141
          %s143 = smul.addr %s142, 32
          %s144 = scalar_lea.hbm %s0, %s143
          %s145 = sshll.u32 %s137, 4
          %s146 = int_to_ptr.vmem [resolvable:$true] %s145
          %151 = dma.hbm_to_vmem [thread:$0]  %s144, 128, %s146, %s134, 32, 32, 2
        $region20: #{tpu_custom_call.1} parent=15 // pred_fallthru
          _
        // Predicated region
        $region21: #{tpu_custom_call.1} parent=15 // pred_check
          %p152 = pneg %p79
        $region22: #{tpu_custom_call.1} parent=15 // pred_check_branch
          %154 = sbr.rel (%p152) target = $region24
        $region23: #{tpu_custom_call.1} parent=15 // pred_region
          %s155 = sand.u32 %s69, 1
          %s156 = scalar_lea.sflag [#allocation6], %s155
          %s157 = sand.u32 %s69, 1
          %s158 = smul.addr %s157, 2
          %s159 = scalar_lea.vmem [#allocation5], %s158
          %s161 = ssub.s32 32, 32
          %162 = vsyncadd %s156, %s161
          %s163 = sadd.s32 %s25, %s24
          %s164 = smul.addr %s163, 32
          %s165 = scalar_lea.hbm %s1, %s164
          %s167 = sshll.u32 %s159, 4
          %s168 = int_to_ptr.vmem [resolvable:$true] %s167
          %170 = dma.hbm_to_vmem [thread:$0]  %s165, 32, %s168, %s156
        $region24: #{tpu_custom_call.1} parent=15 // pred_fallthru
          _
      $region16: #{tpu_custom_call.1} parent=5 // pred_fallthru
        _
      %p171 = scmp.le.s32.totalorder 1, %s17
      %p172 = scmp.lt.s32.totalorder %s17, 3
      %p173 = pnand %p171, %p172
      %p174 = pneg %p173
      // Predicated region
      $region25: #{tpu_custom_call.1} parent=5 // pred_check
        _
      $region26: #{tpu_custom_call.1} parent=5 // pred_check_branch
        %176 = sbr.rel (%p173) target = $region28
      $region27: #{tpu_custom_call.1} parent=5 // pred_region
        %s177 = ssub.s32 %s17, 1
        %s178 = sand.u32 %s44, 1
        %s179 = scalar_lea.sflag [#allocation3], %s178
        %s180 = sand.u32 %s44, 1
        %s181 = smul.addr %s180, 8
        %s182 = scalar_lea.vmem [#allocation2], %s181
        // Predicated region
        $region29: #{tpu_custom_call.1} parent=27 // pred_check
          %p183 = pneg %p57
        $region30: #{tpu_custom_call.1} parent=27 // pred_check_branch
          %185 = sbr.rel (%p183) target = $region32
        $region31: #{tpu_custom_call.1} parent=27 // pred_region
          %186 = dma.done %s179, 128
        $region32: #{tpu_custom_call.1} parent=27 // pred_fallthru
          _
        %s187 = sand.u32 %s72, 1
        %s188 = scalar_lea.sflag [#allocation6], %s187
        %s189 = sand.u32 %s72, 1
        %s190 = smul.addr %s189, 2
        %s191 = scalar_lea.vmem [#allocation5], %s190
        // Predicated region
        $region33: #{tpu_custom_call.1} parent=27 // pred_check
          %p192 = pneg %p85
        $region34: #{tpu_custom_call.1} parent=27 // pred_check_branch
          %194 = sbr.rel (%p192) target = $region36
        $region35: #{tpu_custom_call.1} parent=27 // pred_region
          %195 = dma.done %s188, 32
        $region36: #{tpu_custom_call.1} parent=27 // pred_fallthru
          _
        %s196 = sand.u32 %s44, 1
        %s197 = scalar_lea.sflag [#allocation3], %s196
        %s198 = sand.u32 %s44, 1
        %s199 = smul.addr %s198, 8
        %s200 = scalar_lea.vmem [#allocation2], %s199
        %p201 = pneg %p57
        %p202 = pneg %p54
        %s203 = sand.u32 %s72, 1
        %s204 = scalar_lea.sflag [#allocation6], %s203
        %s205 = sand.u32 %s72, 1
        %s206 = smul.addr %s205, 2
        %s207 = scalar_lea.vmem [#allocation5], %s206
        %p208 = pneg %p85
        %p209 = pneg %p82
        %p210 = pneg %p111
        %p211 = pneg %p108
        %s212 = sand.u32 %s98, 1
        %s213 = scalar_lea.sflag [#allocation4], %s212
        %s214 = sand.u32 %s98, 1
        %s215 = smul.addr %s214, 2
        %s216 = scalar_lea.vmem [#allocation7], %s215
        %p217 = scmp.eq.s32.totalorder %s27, 0
        // Predicated region
        $region37: #{tpu_custom_call.1} parent=27 // pred_check
          %p218 = pneg %p217
        $region38: #{tpu_custom_call.1} parent=27 // pred_check_branch
          %220 = sbr.rel (%p218) target = $region40
        $region39: #{tpu_custom_call.1} parent=27 // pred_region
          %221 = vst [vmem:[%s216] sm:$0x3] 0.0
        $region40: #{tpu_custom_call.1} parent=27 // pred_fallthru
          _
        %v222 = vld [vmem:[%s182] sm:$0x3]
        %v223 = vld [vmem:[%s182 + $0x2] sm:$0x3]
        %v224 = vld [vmem:[%s182 + $0x4] sm:$0x3]
        %v225 = vld [vmem:[%s182 + $0x6] sm:$0x3]
        %v226 = vld [vmem:[%s191] sm:$0x3]
        %vm227 = vcmask 1041408
        %v228 = vsel %vm227, %v222, -inf
        %v229 = vsel %vm227, %v223, -inf
        %v230 = vsel %vm227, %v224, -inf
        %v231 = vsel %vm227, %v225, -inf
        %v232 = vmax.f32 %v228, %v229
        %v233 = vmax.f32 %v230, %v231
        %v234 = vmax.f32 %v232, %v233
        %v235 = vsub.f32 %v222, %v234
        %v236 = vsub.f32 %v223, %v234
        %v237 = vsub.f32 %v224, %v234
        %v238 = vsub.f32 %v225, %v234
        %v239 = vmul.f32 %v235, 1.442695
        %v240 = vpow.pop %v239
        %v241 = vmul.f32 %v236, 1.442695
        %v242 = vpow.pop %v241
        %v243 = vmul.f32 %v237, 1.442695
        %v244 = vpow.pop %v243
        %v245 = vmul.f32 %v238, 1.442695
        %v246 = vpow.pop %v245
        %v247 = vsel %vm227, %v240, 0.0
        %v248 = vsel %vm227, %v242, 0.0
        %v249 = vadd.f32 %v247, %v248
        %v250 = vsel %vm227, %v244, 0.0
        %v251 = vadd.f32 %v249, %v250
        %v252 = vsel %vm227, %v246, 0.0
        %v253 = vadd.f32 %v251, %v252
        %v254 = vlog2.pop %v253
        %v255 = vmul.f32 %v254, 0.6931472
        %v256 = vadd.f32 %v255, %v234
        %vm257 = vcmp.eq.s32.totalorder %v226, 0
        %vm258 = vcmp.eq.s32.totalorder %v226, 1
        %vm259 = vcmp.eq.s32.totalorder %v226, 2
        %vm260 = vcmp.eq.s32.totalorder %v226, 3
        %v261 = vsel %vm257, %v222, 0.0
        %v262 = vsel %vm258, %v223, 0.0
        %v263 = vsel %vm259, %v224, 0.0
        %v264 = vsel %vm260, %v225, 0.0
        %v265 = vsel %vm227, %v261, 0.0
        %v266 = vsel %vm227, %v262, 0.0
        %v267 = vadd.f32 %v265, %v266
        %v268 = vsel %vm227, %v263, 0.0
        %v269 = vadd.f32 %v267, %v268
        %v270 = vsel %vm227, %v264, 0.0
        %v271 = vadd.f32 %v269, %v270
        %vm272 = vcmp.ge.s32.totalorder %v226, 0
        %vm273 = vcmp.lt.s32.totalorder %v226, 4
        %vm274 = vmand %vm272, %vm273
        %v275 = vsub.f32 %v256, %v271
        %v276 = vsel %vm274, %v275, 0.0
        %v277 = vld [vmem:[%s216] sm:$0x3]
        %v278 = vadd.f32 %v277, %v276
        %279 = vst [vmem:[%s216] sm:$0x3] %v278
        %s280 = sand.u32 %s98, 1
        %s281 = scalar_lea.sflag [#allocation4], %s280
        %s282 = sand.u32 %s98, 1
        %s283 = smul.addr %s282, 2
        %s284 = scalar_lea.vmem [#allocation7], %s283
        // Predicated region
        $region41: #{tpu_custom_call.1} parent=27 // pred_check
          %p285 = pneg %p108
        $region42: #{tpu_custom_call.1} parent=27 // pred_check_branch
          %287 = sbr.rel (%p285) target = $region44
        $region43: #{tpu_custom_call.1} parent=27 // pred_region
          %s289 = ssub.s32 32, 32
          %290 = vsyncadd %s281, %s289
          %s291 = smul.addr %s26, 32
          %s292 = scalar_lea.hbm %s2, %s291
          %s294 = sshll.u32 %s284, 4
          %s295 = int_to_ptr.vmem [resolvable:$true] %s294
          %297 = dma.vmem_to_hbm [thread:$0]  %s295, 32, %s292, %s281
        $region44: #{tpu_custom_call.1} parent=27 // pred_fallthru
          _
      $region28: #{tpu_custom_call.1} parent=5 // pred_fallthru
        _
      %p298 = scmp.le.s32.totalorder 2, %s17
      // Predicated region
      $region45: #{tpu_custom_call.1} parent=5 // pred_check
        %p299 = pneg %p298
      $region46: #{tpu_custom_call.1} parent=5 // pred_check_branch
        %301 = sbr.rel (%p299) target = $region48
      $region47: #{tpu_custom_call.1} parent=5 // pred_region
        %s302 = ssub.s32 %s17, 2
        // Predicated region
        $region49: #{tpu_custom_call.1} parent=47 // pred_check
          %p303 = pneg %p114
        $region50: #{tpu_custom_call.1} parent=47 // pred_check_branch
          %305 = sbr.rel (%p303) target = $region52
        $region51: #{tpu_custom_call.1} parent=47 // pred_region
          %s306 = sand.u32 %s99, 1
          %s307 = scalar_lea.sflag [#allocation4], %s306
          %s308 = sand.u32 %s99, 1
          %s309 = smul.addr %s308, 2
          %s310 = scalar_lea.vmem [#allocation7], %s309
          %311 = dma.done %s307, 32
        $region52: #{tpu_custom_call.1} parent=47 // pred_fallthru
          _
      $region48: #{tpu_custom_call.1} parent=5 // pred_fallthru
        _
    $region6: #{tpu_custom_call.1} parent=1 // loop_footer
      %s21 = sadd.s32 1, %s17
    $region7: #{tpu_custom_call.1} parent=1 // loop_footer_branch
      %16 = sbr.rel target = $region3
    $region8: #{tpu_custom_call.1} parent=1 // loop_exit
      _
    %312 = vsyncpa [#allocation3], 1
    %s313 = scalar_lea.sflag [#allocation3], 1
    %314 = vsyncpa %s313, 1
    %315 = vsyncpa [#allocation6], 1
    %s316 = scalar_lea.sflag [#allocation6], 1
    %317 = vsyncpa %s316, 1
    %318 = vsyncpa [#allocation4], 1
    %s319 = scalar_lea.sflag [#allocation4], 1
    %320 = vsyncpa %s319, 1

</llo_original>
